<compile_context>
chip_gen: v6e
topology: v6e:2x2x1
jax: 0.10.0
libtpu: 0.0.40
codegen_flags: <defaults>
</compile_context>

<pallas_src>
import functools

import jax
import jax.numpy as jnp
from jax.experimental import pallas as pl
from jax.experimental.pallas import tpu as pltpu

_LANE = 128
_FAST_PATH_BYTES = 1 * 1024 * 1024     # below this, plain XLA wins on launch overhead
_SMALL_TILE_BYTES = 512 * 1024         # per-key block size below which Buffered(3) helps


def _hw_config(budget_override):
    """Return (vmem_budget_bytes, vmem_limit_bytes, num_tensorcores) for this chip."""
    vmem_cap = 128 * 1024 * 1024
    num_cores = 1
    kind = ""
    try:
        kind = jax.devices()[0].device_kind.lower()
    except Exception:
        pass
    try:
        info = pltpu.get_tpu_info()
        vmem_cap = int(getattr(info, "vmem_capacity_bytes", vmem_cap))
        for attr in ("num_cores", "num_tensorcores", "tensorcores_per_chip",
                     "tensorcore_count", "num_tensor_cores"):
            v = getattr(info, attr, None)
            if v:
                num_cores = max(int(v), 1)
                break
    except Exception:
        pass  # interpret mode / AOT on CPU: keep safe defaults

    small_vmem = (vmem_cap < 100 * 1024 * 1024) or ("7" in kind)
    if budget_override is not None:
        budget = int(budget_override)
    elif small_vmem:
        budget = 24 * 1024 * 1024       # v7x-class: 64 MiB VMEM per TensorCore
    else:
        budget = 64 * 1024 * 1024       # v5e / v6e: 128 MiB VMEM

    # vmem_limit tracks the budget (double-buffered inputs) plus headroom for
    # the vreg-sized accumulators, outputs and Mosaic-internal scratch.
    limit = max(32 * 1024 * 1024, (budget * 3) // 2)
    limit = min(limit, vmem_cap - 8 * 1024 * 1024)
    budget = min(budget, limit - 6 * 1024 * 1024)
    return budget, limit, num_cores


def _make_loss_kernel(num_keys, tile_rows, steps_per_slot, steps_total,
                      partial_rows, num_slots):
    """Kernel for `num_keys` loss tensors viewed as (num_rows, 128) each."""
    last_block = steps_total - 1
    has_partial = partial_rows < tile_rows
    has_dup = num_slots * steps_per_slot > steps_total

    def kernel(*refs):
        in_refs = refs[:num_keys]
        key_out = refs[num_keys]                          # (1, K, 128)
        clamp_out = refs[num_keys + 1]                    # (1, 1, 128)
        acc_refs = refs[num_keys + 2: 2 * num_keys + 2]   # K x (8, 128) f32
        clamp_acc = refs[2 * num_keys + 2]                # (8, 128) f32

        s = pl.program_id(0)       # slot axis: CORE_PARALLEL on 2-TC parts
        i = pl.program_id(1)       # row-range step within a slot
        step = s * steps_per_slot + i

        @pl.when(i == 0)
        def _():
            for a in acc_refs:
                a[...] = jnp.zeros_like(a)
            clamp_acc[...] = jnp.zeros_like(clamp_acc)

        def accumulate(masked):
            if masked:
                # Only the single partial boundary block pays for the mask.
                valid = (jax.lax.broadcasted_iota(jnp.int32, (tile_rows, _LANE), 0)
                         < partial_rows)
            total = None
            for k in range(num_keys):
                x = in_refs[k][...].astype(jnp.float32)
                if masked:
                    x = jnp.where(valid, x, 0.0)
                # vreg-sized accumulator: pure VPU adds, no full-tile stores.
                acc_refs[k][...] += x.reshape(-1, 8, _LANE).sum(axis=0)
                total = x if total is None else total + x
            # torch.clamp(sum, max=100) contribution of this block.
            clamp_acc[...] += jnp.minimum(total, 100.0).reshape(-1, 8, _LANE).sum(axis=0)

        if has_partial:
            if steps_total == 1 and not has_dup:
                accumulate(True)
            else:
                if steps_total > 1:
                    @pl.when(step < last_block)
                    def _():
                        accumulate(False)          # unmasked interior fast path

                @pl.when(step == last_block)
                def _():
                    accumulate(True)               # masked boundary block
                # step > last_block (duplicated tail step): skipped entirely.
        elif has_dup:
            @pl.when(step <= last_block)
            def _():
                accumulate(False)
        else:
            accumulate(False)

        # One epilogue per slot: sublane-reduce the vreg accumulators,
        # lane-dense (…, 128) store.
        @pl.when(i == steps_per_slot - 1)
        def _():
            key_rows = [jnp.sum(acc_refs[k][...], axis=0, keepdims=True)
                        for k in range(num_keys)]          # K x (1, 128)
            key_out[...] = jnp.concatenate(key_rows, axis=0).reshape(
                1, num_keys, _LANE)
            clamp_out[...] = jnp.sum(clamp_acc[...], axis=0).reshape(1, 1, _LANE)

    return kernel


@functools.partial(
    jax.jit,
    static_argnames=("n_elems", "full_rows", "tile_rows", "steps_total",
                     "steps_per_slot", "num_slots", "partial_rows",
                     "extra_buffered", "vmem_limit_bytes", "use_core_parallel"))
def _run_loss_kernel(*flats, n_elems, full_rows, tile_rows, steps_total,
                     steps_per_slot, num_slots, partial_rows, extra_buffered,
                     vmem_limit_bytes, use_core_parallel):
    num_keys = len(flats)
    main_n = full_rows * _LANE

    # Lane-dense (full_rows, 128) views; no jnp.pad copy of the whole tensor.
    mats = [f[:main_n].reshape(full_rows, _LANE) for f in flats]

    # Ragged tail (< 128 elements): tiny XLA reduction added to the partials.
    tail_len = n_elems - main_n
    if tail_len > 0:
        tails = [f[main_n:].astype(jnp.float32) for f in flats]
        tail_key = jnp.stack([jnp.sum(t) for t in tails])            # (K,)
        tail_total = functools.reduce(lambda a, b: a + b, tails)
        tail_clamp = jnp.sum(jnp.minimum(tail_total, 100.0))
    else:
        tail_key = jnp.zeros((num_keys,), jnp.float32)
        tail_clamp = jnp.float32(0.0)

    kernel = _make_loss_kernel(num_keys, tile_rows, steps_per_slot, steps_total,
                               partial_rows, num_slots)

    last_block = steps_total - 1

    def in_idx(s, i):
        # Duplicated tail steps of the 2-slot split re-read the last real block;
        # their compute is skipped inside the kernel.
        return (jnp.minimum(s * steps_per_slot + i, last_block), 0)

    in_specs = None
    buffered_cls = getattr(pl, "Buffered", None)
    if extra_buffered and buffered_cls is not None:
        try:
            in_specs = [pl.BlockSpec((tile_rows, _LANE), in_idx,
                                     pipeline_mode=buffered_cls(3))
                        for _ in range(num_keys)]
        except TypeError:
            in_specs = None
    if in_specs is None:
        in_specs = [pl.BlockSpec((tile_rows, _LANE), in_idx)
                    for _ in range(num_keys)]

    if use_core_parallel:
        dims = (getattr(pltpu, "CORE_PARALLEL", "parallel"),
                getattr(pltpu, "ARBITRARY", "arbitrary"))
    else:
        dims = ("arbitrary", "arbitrary")

    total_bytes = sum(int(m.size) * m.dtype.itemsize for m in mats)
    cost = pl.CostEstimate(
        flops=(3 * num_keys + 2) * full_rows * _LANE,
        transcendentals=0,
        bytes_accessed=total_bytes + num_slots * (num_keys + 1) * _LANE * 4)

    key_part, clamp_part = pl.pallas_call(
        kernel,
        out_shape=(
            jax.ShapeDtypeStruct((num_slots, num_keys, _LANE), jnp.float32),
            jax.ShapeDtypeStruct((num_slots, 1, _LANE), jnp.float32),
        ),
        grid_spec=pltpu.PrefetchScalarGridSpec(
            num_scalar_prefetch=0,
            grid=(num_slots, steps_per_slot),
            in_specs=in_specs,
            out_specs=(
                pl.BlockSpec((1, num_keys, _LANE), lambda s, i: (s, 0, 0)),
                pl.BlockSpec((1, 1, _LANE), lambda s, i: (s, 0, 0)),
            ),
            scratch_shapes=[pltpu.VMEM((8, _LANE), jnp.float32)
                            for _ in range(num_keys + 1)],
        ),
        compiler_params=pltpu.CompilerParams(
            dimension_semantics=dims,
            vmem_limit_bytes=vmem_limit_bytes,
        ),
        cost_estimate=cost,
    )(*mats)

    inv_n = 1.0 / float(n_elems)
    key_means = (jnp.sum(key_part, axis=(0, 2)) + tail_key) * inv_n   # (K,)
    clamped_mean = (jnp.sum(clamp_part) + tail_clamp) * inv_n         # scalar
    return key_means, clamped_mean


def loss_forward(end_points, *, force_pallas=None, vmem_budget_bytes=None):
    """JAX/Pallas equivalent of Loss.forward(end_points)."""
    loss_keys = [k for k in end_points if "loss" in k]
    out_dicts = {}
    if not loss_keys:
        out_dicts["loss"] = jnp.float32(0.0)   # clamp(0, max=100).mean() == 0
        return out_dicts

    tensors = [jnp.asarray(end_points[k]) for k in loss_keys]   # keep dtype (bf16 stays bf16)
    n_elems = int(tensors[0].size)
    # TODO(synk): assumes all loss tensors share an element count; PyTorch would
    # broadcast the running elementwise sum and use per-tensor counts for means.
    assert all(int(t.size) == n_elems for t in tensors)

    total_bytes = sum(int(t.size) * t.dtype.itemsize for t in tensors)
    full_rows = n_elems // _LANE
    use_pallas = (force_pallas if force_pallas is not None
                  else total_bytes >= _FAST_PATH_BYTES)
    if full_rows == 0:
        use_pallas = False   # nothing for the streaming kernel to read

    if not use_pallas:
        # Tiny loss dicts: pallas_call launch/per-step overhead dominates.
        total = None
        for k, t in zip(loss_keys, tensors):
            tf = t.astype(jnp.float32)
            out_dicts[k] = jnp.mean(tf)
            total = tf if total is None else total + tf
        out_dicts["loss"] = jnp.mean(jnp.minimum(total, 100.0))
        return out_dicts

    flats = [t.reshape(-1) for t in tensors]
    num_keys = len(flats)

    vmem_budget, vmem_limit, num_cores = _hw_config(vmem_budget_bytes)

    # Tile rows from the VMEM budget: double-buffered input block per key in
    # its original dtype (accumulators are vreg-sized, negligible).
    min_itemsize = min(t.dtype.itemsize for t in tensors)
    row_align = 8 * max(4 // min_itemsize, 1)       # 8 (f32) / 16 (bf16) / 32 (i8)
    per_row_bytes = _LANE * sum(2 * t.dtype.itemsize for t in tensors)
    rows_padded = -(-full_rows // row_align) * row_align
    tile_rows = max(vmem_budget // per_row_bytes, row_align)
    tile_rows = min(tile_rows, rows_padded)
    tile_rows = max((tile_rows // row_align) * row_align, row_align)

    steps_total = -(-full_rows // tile_rows)
    partial_rows = full_rows - (steps_total - 1) * tile_rows   # valid rows in last block

    # 2-slot split only when there really are 2 TensorCores (v7x); on 1-TC
    # parts the slot axis would just duplicate DMA + epilogue work.
    num_slots = 2 if (num_cores >= 2 and steps_total >= 2) else 1
    steps_per_slot = -(-steps_total // num_slots)

    max_block_bytes = tile_rows * _LANE * max(t.dtype.itemsize for t in tensors)
    extra_buffered = (max_block_bytes < _SMALL_TILE_BYTES) and (steps_per_slot >= 3)

    key_means, clamped_mean = _run_loss_kernel(
        *flats, n_elems=n_elems, full_rows=int(full_rows),
        tile_rows=int(tile_rows), steps_total=int(steps_total),
        steps_per_slot=int(steps_per_slot), num_slots=int(num_slots),
        partial_rows=int(partial_rows), extra_buffered=bool(extra_buffered),
        vmem_limit_bytes=int(vmem_limit), use_core_parallel=(num_slots == 2))

    for idx, k in enumerate(loss_keys):
        out_dicts[k] = key_means[idx]
    out_dicts["loss"] = clamped_mean
    return out_dicts


if __name__ == "__main__":
    def reference(end_points):
        ref = {}
        total = None
        for k, v in end_points.items():
            if "loss" in k:
                vf = jnp.asarray(v, jnp.float32)
                ref[k] = jnp.mean(vf)
                total = vf if total is None else total + vf
        ref["loss"] = jnp.mean(jnp.minimum(total, 100.0))
        return ref

    def check(end_points, **kwargs):
        out = loss_forward(end_points, **kwargs)
        out = jax.tree_util.tree_map(jax.block_until_ready, out)
        ref = reference(end_points)
        for k in ref:
            assert jnp.allclose(out[k], ref[k], rtol=1e-5, atol=1e-5), (
                k, out[k], ref[k])

    key = jax.random.PRNGKey(0)
    k1, k2, k3, k4 = jax.random.split(key, 4)

    # 1) Small detection-head style loss dict, forced through the Pallas path
    #    (single masked block) and through the auto plain-XLA fast path.
    end_points = {
        "center_loss": 2.0 * jax.random.uniform(k1, (2, 16, 16), jnp.float32),
        "heatmap_loss": jax.random.normal(k2, (2, 16, 16), jnp.float32) ** 2,
        "size_loss": 50.0 + 200.0 * jax.random.uniform(k3, (2, 16, 16), jnp.float32),
        "features": jax.random.normal(k4, (2, 4, 16, 16), jnp.float32),  # ignored
    }
    check(end_points, force_pallas=True)
    check(end_points)   # auto: tiny input -> plain-XLA fast path

    # 2) Mixed-dtype case with a tiny VMEM budget: multi-step grid, partial
    #    boundary block with the row mask, Buffered(3) input pipelining.
    k5, k6, k7 = jax.random.split(jax.random.PRNGKey(1), 3)
    end_points2 = {
        "seg_loss": jax.random.uniform(k5, (4, 8, 160), jnp.float32),
        "cls_loss": jax.random.normal(k6, (4, 8, 160), jnp.bfloat16),
        "big_loss": 90.0 + 30.0 * jax.random.uniform(k7, (4, 8, 160), jnp.float32),
    }
    check(end_points2, force_pallas=True, vmem_budget_bytes=16 * 1024)

    # 3) Element count not divisible by 128: ragged tail handled in the
    #    wrapper (no jnp.pad copy), masked partial block in the kernel.
    k8, k9 = jax.random.split(jax.random.PRNGKey(2), 2)
    end_points3 = {
        "a_loss": jax.random.normal(k8, (3, 7, 25), jnp.float32),
        "b_loss": jax.random.uniform(k9, (3, 7, 25), jnp.float32),
    }
    check(end_points3, force_pallas=True)

    # 4) Moderate case (>1 MiB): auto-selects the Pallas path with the
    #    generation-default VMEM budget, unmasked single-step fast path.
    ka, kb, kc = jax.random.split(jax.random.PRNGKey(3), 3)
    end_points4 = {
        "recon_loss": jax.random.uniform(ka, (4, 32, 1024), jnp.float32),
        "kl_loss": jax.random.normal(kb, (4, 32, 1024), jnp.float32) ** 2,
        "aux_loss": 90.0 + 30.0 * jax.random.uniform(kc, (4, 32, 1024), jnp.float32),
    }
    check(end_points4)

    print("KERNEL_OK")
</pallas_src>

<mosaic_0001>
module attributes {stable_mosaic.version = 11 : i64} {
  func.func @kernel(%arg0: i32, %arg1: i32, %arg2: memref<8x128xf32, #tpu.memory_space<vmem>>, %arg3: memref<8x128xf32, #tpu.memory_space<vmem>>, %arg4: memref<8x128xf32, #tpu.memory_space<vmem>>, %arg5: memref<1x3x128xf32, #tpu.memory_space<vmem>>, %arg6: memref<1x1x128xf32, #tpu.memory_space<vmem>>, %arg7: memref<8x128xf32, #tpu.memory_space<vmem>>, %arg8: memref<8x128xf32, #tpu.memory_space<vmem>>, %arg9: memref<8x128xf32, #tpu.memory_space<vmem>>, %arg10: memref<8x128xf32, #tpu.memory_space<vmem>>) attributes {dimension_semantics = [#tpu.dimension_semantics<arbitrary>, #tpu.dimension_semantics<arbitrary>], iteration_bounds = array<i64: 1, 1>, scalar_prefetch = 0 : i64, scratch_operands = 4 : i64, tpu.core_type = #tpu.core_type<tc>, window_params = [{transform_indices = @transform_0, window_bounds = array<i64: 8, 128>}, {transform_indices = @transform_1, window_bounds = array<i64: 8, 128>}, {transform_indices = @transform_2, window_bounds = array<i64: 8, 128>}, {transform_indices = @transform_3, window_bounds = array<i64: 1, 3, 128>}, {transform_indices = @transform_4, window_bounds = array<i64: 1, 1, 128>}]} {
    %c0_i32 = arith.constant 0 : i32
    %0 = arith.cmpi eq, %arg1, %c0_i32 : i32
    %1 = arith.extui %0 : i1 to i32
    %c0_i32_0 = arith.constant 0 : i32
    %2 = arith.cmpi ne, %1, %c0_i32_0 : i32
    scf.if %2 {
      %cst_31 = arith.constant 0.000000e+00 : f32
      %42 = vector.broadcast %cst_31 : f32 to vector<8x128xf32>
      %c0_32 = arith.constant 0 : index
      %c0_33 = arith.constant 0 : index
      %43 = vector.load %arg7[%c0_32, %c0_33] : memref<8x128xf32, #tpu.memory_space<vmem>>, vector<8x128xf32>
      tpu.vector_store %arg7[%c0_32, %c0_33], %42 {strides = array<i32>} : memref<8x128xf32, #tpu.memory_space<vmem>>, vector<8x128xf32>,
      %cst_34 = arith.constant 0.000000e+00 : f32
      %44 = vector.broadcast %cst_34 : f32 to vector<8x128xf32>
      %c0_35 = arith.constant 0 : index
      %c0_36 = arith.constant 0 : index
      %45 = vector.load %arg8[%c0_35, %c0_36] : memref<8x128xf32, #tpu.memory_space<vmem>>, vector<8x128xf32>
      tpu.vector_store %arg8[%c0_35, %c0_36], %44 {strides = array<i32>} : memref<8x128xf32, #tpu.memory_space<vmem>>, vector<8x128xf32>,
      %cst_37 = arith.constant 0.000000e+00 : f32
      %46 = vector.broadcast %cst_37 : f32 to vector<8x128xf32>
      %c0_38 = arith.constant 0 : index
      %c0_39 = arith.constant 0 : index
      %47 = vector.load %arg9[%c0_38, %c0_39] : memref<8x128xf32, #tpu.memory_space<vmem>>, vector<8x128xf32>
      tpu.vector_store %arg9[%c0_38, %c0_39], %46 {strides = array<i32>} : memref<8x128xf32, #tpu.memory_space<vmem>>, vector<8x128xf32>,
      %cst_40 = arith.constant 0.000000e+00 : f32
      %48 = vector.broadcast %cst_40 : f32 to vector<8x128xf32>
      %c0_41 = arith.constant 0 : index
      %c0_42 = arith.constant 0 : index
      %49 = vector.load %arg10[%c0_41, %c0_42] : memref<8x128xf32, #tpu.memory_space<vmem>>, vector<8x128xf32>
      tpu.vector_store %arg10[%c0_41, %c0_42], %48 {strides = array<i32>} : memref<8x128xf32, #tpu.memory_space<vmem>>, vector<8x128xf32>,
    } else {
    }
    %3 = tpu.iota {dimensions = array<i32: 0>} : vector<8x128xi32>
    %c4_i32 = arith.constant 4 : i32
    %4 = vector.broadcast %c4_i32 : i32 to vector<8x128xi32>
    %5 = arith.cmpi slt, %3, %4 : vector<8x128xi32>
    %c0 = arith.constant 0 : index
    %c0_1 = arith.constant 0 : index
    %6 = vector.load %arg2[%c0, %c0_1] : memref<8x128xf32, #tpu.memory_space<vmem>>, vector<8x128xf32>
    %cst = arith.constant 0.000000e+00 : f32
    %7 = vector.broadcast %cst : f32 to vector<8x128xf32>
    %8 = arith.select %5, %6, %7 : vector<8x128xi1>, vector<8x128xf32>
    %c0_2 = arith.constant 0 : index
    %c0_3 = arith.constant 0 : index
    %9 = vector.load %arg7[%c0_2, %c0_3] : memref<8x128xf32, #tpu.memory_space<vmem>>, vector<8x128xf32>
    %10 = vector.shape_cast %8 : vector<8x128xf32> to vector<1x8x128xf32>
    %cst_4 = arith.constant dense<0.000000e+00> : vector<8x128xf32>
    %11 = vector.multi_reduction <add>, %10, %cst_4 [0] : vector<1x8x128xf32> to vector<8x128xf32>
    %12 = arith.addf %9, %11 : vector<8x128xf32>
    %c0_5 = arith.constant 0 : index
    %c0_6 = arith.constant 0 : index
    %13 = vector.load %arg7[%c0_5, %c0_6] : memref<8x128xf32, #tpu.memory_space<vmem>>, vector<8x128xf32>
    tpu.vector_store %arg7[%c0_5, %c0_6], %12 {strides = array<i32>} : memref<8x128xf32, #tpu.memory_space<vmem>>, vector<8x128xf32>,
    %c0_7 = arith.constant 0 : index
    %c0_8 = arith.constant 0 : index
    %14 = vector.load %arg3[%c0_7, %c0_8] : memref<8x128xf32, #tpu.memory_space<vmem>>, vector<8x128xf32>
    %cst_9 = arith.constant 0.000000e+00 : f32
    %15 = vector.broadcast %cst_9 : f32 to vector<8x128xf32>
    %16 = arith.select %5, %14, %15 : vector<8x128xi1>, vector<8x128xf32>
    %c0_10 = arith.constant 0 : index
    %c0_11 = arith.constant 0 : index
    %17 = vector.load %arg8[%c0_10, %c0_11] : memref<8x128xf32, #tpu.memory_space<vmem>>, vector<8x128xf32>
    %18 = vector.shape_cast %16 : vector<8x128xf32> to vector<1x8x128xf32>
    %cst_12 = arith.constant dense<0.000000e+00> : vector<8x128xf32>
    %19 = vector.multi_reduction <add>, %18, %cst_12 [0] : vector<1x8x128xf32> to vector<8x128xf32>
    %20 = arith.addf %17, %19 : vector<8x128xf32>
    %c0_13 = arith.constant 0 : index
    %c0_14 = arith.constant 0 : index
    %21 = vector.load %arg8[%c0_13, %c0_14] : memref<8x128xf32, #tpu.memory_space<vmem>>, vector<8x128xf32>
    tpu.vector_store %arg8[%c0_13, %c0_14], %20 {strides = array<i32>} : memref<8x128xf32, #tpu.memory_space<vmem>>, vector<8x128xf32>,
    %22 = arith.addf %8, %16 : vector<8x128xf32>
    %c0_15 = arith.constant 0 : index
    %c0_16 = arith.constant 0 : index
    %23 = vector.load %arg4[%c0_15, %c0_16] : memref<8x128xf32, #tpu.memory_space<vmem>>, vector<8x128xf32>
    %cst_17 = arith.constant 0.000000e+00 : f32
    %24 = vector.broadcast %cst_17 : f32 to vector<8x128xf32>
    %25 = arith.select %5, %23, %24 : vector<8x128xi1>, vector<8x128xf32>
    %c0_18 = arith.constant 0 : index
    %c0_19 = arith.constant 0 : index
    %26 = vector.load %arg9[%c0_18, %c0_19] : memref<8x128xf32, #tpu.memory_space<vmem>>, vector<8x128xf32>
    %27 = vector.shape_cast %25 : vector<8x128xf32> to vector<1x8x128xf32>
    %cst_20 = arith.constant dense<0.000000e+00> : vector<8x128xf32>
    %28 = vector.multi_reduction <add>, %27, %cst_20 [0] : vector<1x8x128xf32> to vector<8x128xf32>
    %29 = arith.addf %26, %28 : vector<8x128xf32>
    %c0_21 = arith.constant 0 : index
    %c0_22 = arith.constant 0 : index
    %30 = vector.load %arg9[%c0_21, %c0_22] : memref<8x128xf32, #tpu.memory_space<vmem>>, vector<8x128xf32>
    tpu.vector_store %arg9[%c0_21, %c0_22], %29 {strides = array<i32>} : memref<8x128xf32, #tpu.memory_space<vmem>>, vector<8x128xf32>,
    %31 = arith.addf %22, %25 : vector<8x128xf32>
    %c0_23 = arith.constant 0 : index
    %c0_24 = arith.constant 0 : index
    %32 = vector.load %arg10[%c0_23, %c0_24] : memref<8x128xf32, #tpu.memory_space<vmem>>, vector<8x128xf32>
    %cst_25 = arith.constant 1.000000e+02 : f32
    %33 = vector.broadcast %cst_25 : f32 to vector<8x128xf32>
    %34 = arith.minimumf %31, %33 : vector<8x128xf32>
    %35 = vector.shape_cast %34 : vector<8x128xf32> to vector<1x8x128xf32>
    %cst_26 = arith.constant dense<0.000000e+00> : vector<8x128xf32>
    %36 = vector.multi_reduction <add>, %35, %cst_26 [0] : vector<1x8x128xf32> to vector<8x128xf32>
    %37 = arith.addf %32, %36 : vector<8x128xf32>
    %c0_27 = arith.constant 0 : index
    %c0_28 = arith.constant 0 : index
    %38 = vector.load %arg10[%c0_27, %c0_28] : memref<8x128xf32, #tpu.memory_space<vmem>>, vector<8x128xf32>
    tpu.vector_store %arg10[%c0_27, %c0_28], %37 {strides = array<i32>} : memref<8x128xf32, #tpu.memory_space<vmem>>, vector<8x128xf32>,
    %c0_i32_29 = arith.constant 0 : i32
    %39 = arith.cmpi eq, %arg1, %c0_i32_29 : i32
    %40 = arith.extui %39 : i1 to i32
    %c0_i32_30 = arith.constant 0 : i32
    %41 = arith.cmpi ne, %40, %c0_i32_30 : i32
    scf.if %41 {
      %c0_31 = arith.constant 0 : index
      %c0_32 = arith.constant 0 : index
      %42 = vector.load %arg7[%c0_31, %c0_32] : memref<8x128xf32, #tpu.memory_space<vmem>>, vector<8x128xf32>
      %cst_33 = arith.constant dense<0.000000e+00> : vector<128xf32>
      %43 = vector.multi_reduction <add>, %42, %cst_33 [0] : vector<8x128xf32> to vector<128xf32>
      %44 = vector.shape_cast %43 : vector<128xf32> to vector<1x128xf32>
      %c0_34 = arith.constant 0 : index
      %c0_35 = arith.constant 0 : index
      %45 = vector.load %arg8[%c0_34, %c0_35] : memref<8x128xf32, #tpu.memory_space<vmem>>, vector<8x128xf32>
      %cst_36 = arith.constant dense<0.000000e+00> : vector<128xf32>
      %46 = vector.multi_reduction <add>, %45, %cst_36 [0] : vector<8x128xf32> to vector<128xf32>
      %47 = vector.shape_cast %46 : vector<128xf32> to vector<1x128xf32>
      %c0_37 = arith.constant 0 : index
      %c0_38 = arith.constant 0 : index
      %48 = vector.load %arg9[%c0_37, %c0_38] : memref<8x128xf32, #tpu.memory_space<vmem>>, vector<8x128xf32>
      %cst_39 = arith.constant dense<0.000000e+00> : vector<128xf32>
      %49 = vector.multi_reduction <add>, %48, %cst_39 [0] : vector<8x128xf32> to vector<128xf32>
      %50 = vector.shape_cast %49 : vector<128xf32> to vector<1x128xf32>
      %51 = tpu.concatenate %44, %47, %50 in 0 : vector<1x128xf32>, vector<1x128xf32>, vector<1x128xf32> -> vector<3x128xf32>
      %52 = vector.shape_cast %51 : vector<3x128xf32> to vector<1x3x128xf32>
      %c0_40 = arith.constant 0 : index
      %c0_41 = arith.constant 0 : index
      %c0_42 = arith.constant 0 : index
      %53 = vector.load %arg5[%c0_40, %c0_41, %c0_42] : memref<1x3x128xf32, #tpu.memory_space<vmem>>, vector<1x3x128xf32>
      tpu.vector_store %arg5[%c0_40, %c0_41, %c0_42], %52 {strides = array<i32>} : memref<1x3x128xf32, #tpu.memory_space<vmem>>, vector<1x3x128xf32>,
      %c0_43 = arith.constant 0 : index
      %c0_44 = arith.constant 0 : index
      %54 = vector.load %arg10[%c0_43, %c0_44] : memref<8x128xf32, #tpu.memory_space<vmem>>, vector<8x128xf32>
      %cst_45 = arith.constant dense<0.000000e+00> : vector<128xf32>
      %55 = vector.multi_reduction <add>, %54, %cst_45 [0] : vector<8x128xf32> to vector<128xf32>
      %56 = vector.shape_cast %55 : vector<128xf32> to vector<1x1x128xf32>
      %c0_46 = arith.constant 0 : index
      %c0_47 = arith.constant 0 : index
      %c0_48 = arith.constant 0 : index
      %57 = vector.load %arg6[%c0_46, %c0_47, %c0_48] : memref<1x1x128xf32, #tpu.memory_space<vmem>>, vector<1x1x128xf32>
      tpu.vector_store %arg6[%c0_46, %c0_47, %c0_48], %56 {strides = array<i32>} : memref<1x1x128xf32, #tpu.memory_space<vmem>>, vector<1x1x128xf32>,
    } else {
    }
    return
  }
  func.func @transform_0(%arg0: i32, %arg1: i32) -> (i32, i32) {
    %c1_i32 = arith.constant 1 : i32
    %0 = arith.muli %arg0, %c1_i32 : i32
    %1 = arith.addi %0, %arg1 : i32
    %c0_i32 = arith.constant 0 : i32
    %2 = arith.minsi %1, %c0_i32 : i32
    %c0_i32_0 = arith.constant 0 : i32
    %c0_i32_1 = arith.constant 0 : i32
    return %2, %c0_i32_0 : i32, i32
  }
  func.func @transform_1(%arg0: i32, %arg1: i32) -> (i32, i32) {
    %c1_i32 = arith.constant 1 : i32
    %0 = arith.muli %arg0, %c1_i32 : i32
    %1 = arith.addi %0, %arg1 : i32
    %c0_i32 = arith.constant 0 : i32
    %2 = arith.minsi %1, %c0_i32 : i32
    %c0_i32_0 = arith.constant 0 : i32
    %c0_i32_1 = arith.constant 0 : i32
    return %2, %c0_i32_0 : i32, i32
  }
  func.func @transform_2(%arg0: i32, %arg1: i32) -> (i32, i32) {
    %c1_i32 = arith.constant 1 : i32
    %0 = arith.muli %arg0, %c1_i32 : i32
    %1 = arith.addi %0, %arg1 : i32
    %c0_i32 = arith.constant 0 : i32
    %2 = arith.minsi %1, %c0_i32 : i32
    %c0_i32_0 = arith.constant 0 : i32
    %c0_i32_1 = arith.constant 0 : i32
    return %2, %c0_i32_0 : i32, i32
  }
  func.func @transform_3(%arg0: i32, %arg1: i32) -> (i32, i32, i32) {
    %c0_i32 = arith.constant 0 : i32
    %c0_i32_0 = arith.constant 0 : i32
    %c0_i32_1 = arith.constant 0 : i32
    return %arg0, %c0_i32, %c0_i32_0 : i32, i32, i32
  }
  func.func @transform_4(%arg0: i32, %arg1: i32) -> (i32, i32, i32) {
    %c0_i32 = arith.constant 0 : i32
    %c0_i32_0 = arith.constant 0 : i32
    %c0_i32_1 = arith.constant 0 : i32
    return %arg0, %c0_i32, %c0_i32_0 : i32, i32, i32
  }
}

</mosaic_0001>

<llo_original>
// kernel: _run_loss_kernel.1
$region0: #{_run_loss_kernel.1}
  #allocation0 [shape = 'u32[]', space=smem, size = 0x4, offset = 0x4, fixed_abs, tag = 'smem constant byte address 0x4 - core index']
  #allocation1 [shape = 'u32[144,128]{1,0:T(1,128)}', space=vmem, size = 0x12000, scoped, tag = 'internal scratch']
  #allocation2 [shape = 'f32[8,128]{1,0:T(8,128)}', space=vmem, size = 0x1000, scoped, tag = 'scratch operand']
  #allocation3 [shape = 'f32[8,128]{1,0:T(8,128)}', space=vmem, size = 0x1000, scoped, tag = 'scratch operand']
  #allocation4 [shape = 'f32[8,128]{1,0:T(8,128)}', space=vmem, size = 0x1000, scoped, tag = 'scratch operand']
  #allocation5 [shape = 'f32[8,128]{1,0:T(8,128)}', space=vmem, size = 0x1000, scoped, tag = 'scratch operand']
  %s0 = inlined_call_operand.vmem [shape: f32[4,128], index: 0, kind: input, shape index: {}]
  %s1 = inlined_call_operand.hbm [shape: f32[4,128], index: 1, kind: input, shape index: {}]
  %s2 = inlined_call_operand.vmem [shape: f32[4,128], index: 2, kind: input, shape index: {}]
  %s3 = inlined_call_operand.vmem [shape: f32[1,3,128], index: 3, kind: output, shape index: {0}]
  %s4 = inlined_call_operand.vmem [shape: f32[1,1,128], index: 4, kind: output, shape index: {1}]
  %5 = xla_tuple %s3, %s4
  %s6 = sld [smem:[#allocation0]]
  $region42: #{_run_loss_kernel.1} parent=0
    _
  %s8 = ssub.s32 1, %s6
  %s9 = scalar_select 0, %s8, %s6
  $region1: #{_run_loss_kernel.1} parent=0
    #allocation6 [shape = 'u8[4096]{0}', space=vmem, size = 0x1000, scoped, tag = 'input window, operand 1, single buffered']
    #allocation7 [shape = 's32[1]{0}', space=sflag, size = 0x4, scoped, tag = 'scoped memory for _run_loss_kernel.1']
    %10 = vsyncpa [#allocation7], 0
    // Predicated region
    $region2: #{_run_loss_kernel.1} parent=1 // pred_check
      _
    $region3: #{_run_loss_kernel.1} parent=1 // pred_check_branch
      %12 = sbr.rel (0) target = $region5
    $region4: #{_run_loss_kernel.1} parent=1 // pred_region
      %s13 = sadd.s32 0, 0
      %p14 = scmp.lt.s32.totalorder %s13, 0
      %s15 = scalar_select %p14, %s13, 0
      %s16 = smul.u32 2, %s15
      %s17 = ssub.s32 1, %s16
      %s18 = smul.u32 64, %s17
      %p19 = scmp.lt.s32.totalorder %s16, 0
      %s20 = scalar_select %p19, %s16, 0
      %s21 = smul.addr %s20, 4
      %s22 = scalar_lea.vmem %s0, %s21
      %s23 = sadd.s32 0, 0
      %p24 = scmp.lt.s32.totalorder %s23, 0
      %s25 = scalar_select %p24, %s23, 0
      %s26 = smul.u32 2, %s25
      %s27 = ssub.s32 1, %s26
      %s28 = smul.u32 64, %s27
    $region5: #{_run_loss_kernel.1} parent=1 // pred_fallthru
      _
    // Predicated region
    $region6: #{_run_loss_kernel.1} parent=1 // pred_check
      _
    $region7: #{_run_loss_kernel.1} parent=1 // pred_check_branch
      %30 = sbr.rel (0) target = $region9
    $region8: #{_run_loss_kernel.1} parent=1 // pred_region
      %s31 = sadd.s32 0, 0
      %p32 = scmp.lt.s32.totalorder %s31, 0
      %s33 = scalar_select %p32, %s31, 0
      %s34 = smul.u32 2, %s33
      %s35 = ssub.s32 1, %s34
      %s36 = smul.u32 64, %s35
      %s38 = ssub.s32 128, %s36
      %39 = vsyncadd [#allocation7], %s38
      %p40 = scmp.ne.s32.totalorder 0, %s36
      %s41 = smul.addr %s34, 64
      %s42 = scalar_lea.hbm %s1, %s41
      %s43 = smul.u32 4, %s35
      %s44 = sshll.u32 [#allocation6], 4
      %s45 = int_to_ptr.vmem [resolvable:$true] %s44
      %s46 = sshll.u32 %s43, 4
      %50 = dma.hbm_to_vmem [thread:$0]  (%p40), %s42, %s46, %s45, [#allocation7], 64, 64, 4
    $region9: #{_run_loss_kernel.1} parent=1 // pred_fallthru
      _
    // Predicated region
    $region10: #{_run_loss_kernel.1} parent=1 // pred_check
      _
    $region11: #{_run_loss_kernel.1} parent=1 // pred_check_branch
      %52 = sbr.rel (0) target = $region13
    $region12: #{_run_loss_kernel.1} parent=1 // pred_region
      %s53 = sadd.s32 0, 0
      %p54 = scmp.lt.s32.totalorder %s53, 0
      %s55 = scalar_select %p54, %s53, 0
      %s56 = smul.u32 2, %s55
      %s57 = ssub.s32 1, %s56
      %s58 = smul.u32 64, %s57
      %p59 = scmp.lt.s32.totalorder %s56, 0
      %s60 = scalar_select %p59, %s56, 0
      %s61 = smul.addr %s60, 4
      %s62 = scalar_lea.vmem %s2, %s61
      %s63 = sadd.s32 0, 0
      %p64 = scmp.lt.s32.totalorder %s63, 0
      %s65 = scalar_select %p64, %s63, 0
      %s66 = smul.u32 2, %s65
      %s67 = ssub.s32 1, %s66
      %s68 = smul.u32 64, %s67
    $region13: #{_run_loss_kernel.1} parent=1 // pred_fallthru
      _
    // Predicated region
    $region14: #{_run_loss_kernel.1} parent=1 // pred_check
      _
    $region15: #{_run_loss_kernel.1} parent=1 // pred_check_branch
      %70 = sbr.rel (0) target = $region17
    $region16: #{_run_loss_kernel.1} parent=1 // pred_region
      %71 = dma.done [#allocation7], 128
    $region17: #{_run_loss_kernel.1} parent=1 // pred_fallthru
      _
    %s72 = sadd.s32 0, 0
    %p73 = scmp.lt.s32.totalorder %s72, 0
    %s74 = scalar_select %p73, %s72, 0
    %s75 = smul.u32 2, %s74
    %s76 = ssub.s32 1, %s75
    %s77 = smul.u32 64, %s76
    %p78 = scmp.lt.s32.totalorder %s75, 0
    %s79 = scalar_select %p78, %s75, 0
    %s80 = smul.addr %s79, 4
    %s81 = scalar_lea.vmem %s0, %s80
    %s82 = sadd.s32 0, 0
    %p83 = scmp.lt.s32.totalorder %s82, 0
    %s84 = scalar_select %p83, %s82, 0
    %s85 = smul.u32 2, %s84
    %s86 = ssub.s32 1, %s85
    %s87 = smul.u32 64, %s86
    %p88 = scmp.lt.s32.totalorder %s85, 0
    %s89 = scalar_select %p88, %s85, 0
    %s90 = smul.addr %s89, 4
    %s91 = scalar_lea.vmem %s2, %s90
    %s92 = sadd.s32 0, 0
    %p93 = scmp.lt.s32.totalorder %s92, 0
    %s94 = scalar_select %p93, %s92, 0
    %s95 = smul.u32 2, %s94
    %s96 = ssub.s32 1, %s95
    %s97 = smul.u32 64, %s96
    %p98 = scmp.lt.s32.totalorder %s95, 0
    %s99 = scalar_select %p98, %s95, 0
    %s100 = smul.addr %s99, 4
    %s101 = scalar_lea.vmem %s0, %s100
    %s102 = sadd.s32 0, 0
    %p103 = scmp.lt.s32.totalorder %s102, 0
    %s104 = scalar_select %p103, %s102, 0
    %s105 = smul.u32 2, %s104
    %s106 = ssub.s32 1, %s105
    %s107 = smul.u32 64, %s106
    %s108 = sadd.s32 0, 0
    %p109 = scmp.lt.s32.totalorder %s108, 0
    %s110 = scalar_select %p109, %s108, 0
    %s111 = smul.u32 2, %s110
    %s112 = ssub.s32 1, %s111
    %s113 = smul.u32 64, %s112
    %s114 = sadd.s32 0, 0
    %p115 = scmp.lt.s32.totalorder %s114, 0
    %s116 = scalar_select %p115, %s114, 0
    %s117 = smul.u32 2, %s116
    %s118 = ssub.s32 1, %s117
    %s119 = smul.u32 64, %s118
    %p120 = scmp.lt.s32.totalorder %s117, 0
    %s121 = scalar_select %p120, %s117, 0
    %s122 = smul.addr %s121, 4
    %s123 = scalar_lea.vmem %s2, %s122
    %s124 = sadd.s32 0, 0
    %p125 = scmp.lt.s32.totalorder %s124, 0
    %s126 = scalar_select %p125, %s124, 0
    %s127 = smul.u32 2, %s126
    %s128 = ssub.s32 1, %s127
    %s129 = smul.u32 64, %s128
    %p130 = scmp.eq.s32.totalorder 0, 0
    // Predicated region
    $region18: #{_run_loss_kernel.1} parent=1 // pred_check
      %p131 = pneg %p130
    $region19: #{_run_loss_kernel.1} parent=1 // pred_check_branch
      %133 = sbr.rel (%p131) target = $region21
    $region20: #{_run_loss_kernel.1} parent=1 // pred_region
      %134 = vst [vmem:[#allocation2] sm:$0xff] 0.0
      %135 = vst [vmem:[#allocation3] sm:$0xff] 0.0
      %136 = vst [vmem:[#allocation4] sm:$0xff] 0.0
      %137 = vst [vmem:[#allocation5] sm:$0xff] 0.0
    $region21: #{_run_loss_kernel.1} parent=1 // pred_fallthru
      _
    %v138 = vlaneseq
    %v139 = vshrl.u32 %v138, 7
    %vm140 = vcmp.lt.s32.totalorder %v139, 4
    %v141 = vld [vmem:[%s101] sm:$0xff]
    %v142 = vsel %vm140, %v141, 0.0
    %v143 = vld [vmem:[#allocation2] sm:$0xff]
    %v144 = vadd.f32 %v142, 0.0
    %v145 = vadd.f32 %v143, %v144
    %146 = vst [vmem:[#allocation2] sm:$0xff] %v145
    %v147 = vld [vmem:[#allocation6] sm:$0xff]
    %v148 = vsel %vm140, %v147, 0.0
    %v149 = vld [vmem:[#allocation3] sm:$0xff]
    %v150 = vadd.f32 %v148, 0.0
    %v151 = vadd.f32 %v149, %v150
    %152 = vst [vmem:[#allocation3] sm:$0xff] %v151
    %v153 = vadd.f32 %v142, %v148
    %v154 = vld [vmem:[%s123] sm:$0xff]
    %v155 = vsel %vm140, %v154, 0.0
    %v156 = vld [vmem:[#allocation4] sm:$0xff]
    %v157 = vadd.f32 %v155, 0.0
    %v158 = vadd.f32 %v156, %v157
    %159 = vst [vmem:[#allocation4] sm:$0xff] %v158
    %v160 = vadd.f32 %v153, %v155
    %v161 = vld [vmem:[#allocation5] sm:$0xff]
    %v162 = vmin.f32 %v160, 100.0
    %v163 = vadd.f32 %v162, 0.0
    %v164 = vadd.f32 %v161, %v163
    %165 = vst [vmem:[#allocation5] sm:$0xff] %v164
    // Predicated region
    $region22: #{_run_loss_kernel.1} parent=1 // pred_check
      %p166 = pneg %p130
    $region23: #{_run_loss_kernel.1} parent=1 // pred_check_branch
      %168 = sbr.rel (%p166) target = $region25
    $region24: #{_run_loss_kernel.1} parent=1 // pred_region
      %v169 = vld [vmem:[#allocation2] sm:$0xff]
      %v170 = vrot.slane %v169, 4
      %v171 = vadd.f32 %v169, %v170
      %v172 = vrot.slane %v171, 2
      %v173 = vadd.f32 %v171, %v172
      %v174 = vrot.slane %v173, 1
      %v175 = vadd.f32 %v173, %v174
      %v176 = vld [vmem:[#allocation3] sm:$0xff]
      %v177 = vrot.slane %v176, 4
      %v178 = vadd.f32 %v176, %v177
      %v179 = vrot.slane %v178, 2
      %v180 = vadd.f32 %v178, %v179
      %v181 = vrot.slane %v180, 1
      %v182 = vadd.f32 %v180, %v181
      %v183 = vld [vmem:[#allocation4] sm:$0xff]
      %v184 = vrot.slane %v183, 4
      %v185 = vadd.f32 %v183, %v184
      %v186 = vrot.slane %v185, 2
      %v187 = vadd.f32 %v185, %v186
      %v188 = vrot.slane %v187, 1
      %v189 = vadd.f32 %v187, %v188
      %vm190 = vcmask 1040384
      %v191 = vsel %vm190, %v175, %v182
      %vm192 = vcmask 1041408
      %v193 = vsel %vm192, %v191, %v189
      %194 = vst [vmem:[%s3] sm:$0x7] %v193
      %v195 = vld [vmem:[#allocation5] sm:$0xff]
      %v196 = vrot.slane %v195, 4
      %v197 = vadd.f32 %v195, %v196
      %v198 = vrot.slane %v197, 2
      %v199 = vadd.f32 %v197, %v198
      %v200 = vrot.slane %v199, 1
      %v201 = vadd.f32 %v199, %v200
      %202 = vst [vmem:[%s4] sm:$0x1] %v201
    $region25: #{_run_loss_kernel.1} parent=1 // pred_fallthru
      _
    // Predicated region
    $region26: #{_run_loss_kernel.1} parent=1 // pred_check
      _
    $region27: #{_run_loss_kernel.1} parent=1 // pred_check_branch
      %204 = sbr.rel (0) target = $region29
    $region28: #{_run_loss_kernel.1} parent=1 // pred_region
      _
    $region29: #{_run_loss_kernel.1} parent=1 // pred_fallthru
      _
    // Predicated region
    $region30: #{_run_loss_kernel.1} parent=1 // pred_check
      _
    $region31: #{_run_loss_kernel.1} parent=1 // pred_check_branch
      %206 = sbr.rel (0) target = $region33
    $region32: #{_run_loss_kernel.1} parent=1 // pred_region
      _
    $region33: #{_run_loss_kernel.1} parent=1 // pred_fallthru
      _
    // Predicated region
    $region34: #{_run_loss_kernel.1} parent=1 // pred_check
      _
    $region35: #{_run_loss_kernel.1} parent=1 // pred_check_branch
      %208 = sbr.rel (0) target = $region37
    $region36: #{_run_loss_kernel.1} parent=1 // pred_region
      _
    $region37: #{_run_loss_kernel.1} parent=1 // pred_fallthru
      _
    // Predicated region
    $region38: #{_run_loss_kernel.1} parent=1 // pred_check
      _
    $region39: #{_run_loss_kernel.1} parent=1 // pred_check_branch
      %210 = sbr.rel (0) target = $region41
    $region40: #{_run_loss_kernel.1} parent=1 // pred_region
      _
    $region41: #{_run_loss_kernel.1} parent=1 // pred_fallthru
      _
    %211 = vsyncpa [#allocation7], 1

</llo_original>
